<compile_context>
chip_gen: v6e
topology: v6e:2x2x1
jax: 0.10.0
libtpu: 0.0.40
codegen_flags: <defaults>
</compile_context>

<pallas_src>
import functools

import jax
import jax.numpy as jnp
from jax.experimental import pallas as pl
from jax.experimental.pallas import tpu as pltpu

_LANE = 1024           # lane-dense output width (multiple of 128)
_MAX_TILE_ROWS = 256   # 256 x 1024 x 4 B = 1 MiB per f32 buffer


def _round_up(x, m):
    return ((x + m - 1) // m) * m


def _bernoulli_kernel(bits_ref, mask_ref, *, thr):
    """mask = 1.0 where bits < thr else 0.0 (thr is a static uint32 threshold)."""
    if thr >= (1 << 32):          # p >= 1.0  -> all ones
        mask_ref[...] = jnp.ones_like(mask_ref)
    elif thr <= 0:                # p <= 0.0  -> all zeros
        mask_ref[...] = jnp.zeros_like(mask_ref)
    else:
        mask_ref[...] = (bits_ref[...] < jnp.uint32(thr)).astype(jnp.float32)


def pan_dropout(edge_index, p=0.5, filter_size=4, key=None):
    """JAX/Pallas equivalent of PANDropout.forward.

    Returns (True, edge_mask_list) with edge_mask_list of shape
    ((filter_size - 1) * num_edges,) float32 containing 0./1. Bernoulli(p)
    samples.  `key` supplies fresh randomness per call (like torch.bernoulli).
    """
    if key is None:
        key = jax.random.PRNGKey(0)

    num_edges = edge_index.shape[1]
    n_masks = filter_size - 1
    total = n_masks * num_edges

    # Lane-dense padded slab: (rows_padded, _LANE), rows_padded multiple of the
    # row-tile size (itself a multiple of 8 sublanes).
    rows = max(1, pl.cdiv(total, _LANE))
    tile_rows = min(_MAX_TILE_ROWS, _round_up(rows, 8))
    rows_padded = _round_up(rows, tile_rows)
    grid = (rows_padded // tile_rows,)

    # Fresh raw bits each call (outside the kernel; see header comment).
    bits = jax.random.bits(key, (rows_padded, _LANE), dtype=jnp.uint32)

    # Static integer threshold for Bernoulli(p): uniform-in-[0,1) < p.
    p_clamped = min(max(float(p), 0.0), 1.0)
    thr = int(round(p_clamped * float(1 << 32)))

    masks = pl.pallas_call(
        functools.partial(_bernoulli_kernel, thr=thr),
        out_shape=jax.ShapeDtypeStruct((rows_padded, _LANE), jnp.float32),
        grid=grid,
        in_specs=[pl.BlockSpec((tile_rows, _LANE), lambda i: (i, 0))],
        out_specs=pl.BlockSpec((tile_rows, _LANE), lambda i: (i, 0)),
        compiler_params=pltpu.CompilerParams(
            dimension_semantics=("parallel",),
        ),
    )(bits)

    # Row-major flatten + drop padding == torch.cat([mask_0, mask_1, ...]).
    edge_mask_list = masks.reshape(-1)[:total]
    return True, edge_mask_list


if __name__ == "__main__":
    root_key = jax.random.PRNGKey(0)
    idx_key, mask_key = jax.random.split(root_key)

    num_edges = 128
    filter_size = 4
    p = 0.5

    # Synthetic edge_index (2, num_edges) as in PyTorch-Geometric.
    edge_index = jax.random.randint(idx_key, (2, num_edges), 0, 32, dtype=jnp.int32)

    ok_flag, edge_mask_list = pan_dropout(
        edge_index, p=p, filter_size=filter_size, key=mask_key
    )
    edge_mask_list = jax.block_until_ready(edge_mask_list)

    # Sanity checks: shape, dtype, values strictly in {0, 1}.
    expected_len = (filter_size - 1) * num_edges
    assert ok_flag is True
    assert edge_mask_list.shape == (expected_len,), edge_mask_list.shape
    assert edge_mask_list.dtype == jnp.float32
    vals = jnp.unique(edge_mask_list)
    assert bool(jnp.all((vals == 0.0) | (vals == 1.0)))
    # With p=0.5 over 384 draws, the mean should be comfortably inside (0.3, 0.7).
    mean_val = float(edge_mask_list.mean())
    assert 0.3 < mean_val < 0.7, mean_val

    print("KERNEL_OK")
</pallas_src>

<mosaic_0001>
module attributes {stable_mosaic.version = 11 : i64} {
  func.func @_bernoulli_kernel(%arg0: i32, %arg1: memref<8x1024xi32, #tpu.memory_space<vmem>>, %arg2: memref<8x1024xf32, #tpu.memory_space<vmem>>) attributes {dimension_semantics = [#tpu.dimension_semantics<parallel>], iteration_bounds = array<i64: 1>, scalar_prefetch = 0 : i64, scratch_operands = 0 : i64, tpu.core_type = #tpu.core_type<tc>, window_params = [{transform_indices = @transform_0, window_bounds = array<i64: 8, 1024>}, {transform_indices = @transform_1, window_bounds = array<i64: 8, 1024>}]} {
    %c0 = arith.constant 0 : index
    %c0_0 = arith.constant 0 : index
    %0 = vector.load %arg1[%c0, %c0_0] : memref<8x1024xi32, #tpu.memory_space<vmem>>, vector<8x1024xi32>
    %c-2147483648_i32 = arith.constant -2147483648 : i32
    %1 = vector.broadcast %c-2147483648_i32 : i32 to vector<8x1024xi32>
    %2 = arith.cmpi ult, %0, %1 : vector<8x1024xi32>
    %3 = arith.extui %2 : vector<8x1024xi1> to vector<8x1024xi32>
    %4 = arith.sitofp %3 : vector<8x1024xi32> to vector<8x1024xf32>
    %c0_1 = arith.constant 0 : index
    %c0_2 = arith.constant 0 : index
    %5 = vector.load %arg2[%c0_1, %c0_2] : memref<8x1024xf32, #tpu.memory_space<vmem>>, vector<8x1024xf32>
    tpu.vector_store %arg2[%c0_1, %c0_2], %4 {strides = array<i32>} : memref<8x1024xf32, #tpu.memory_space<vmem>>, vector<8x1024xf32>,
    return
  }
  func.func @transform_0(%arg0: i32) -> (i32, i32) {
    %c0_i32 = arith.constant 0 : i32
    %c0_i32_0 = arith.constant 0 : i32
    return %arg0, %c0_i32 : i32, i32
  }
  func.func @transform_1(%arg0: i32) -> (i32, i32) {
    %c0_i32 = arith.constant 0 : i32
    %c0_i32_0 = arith.constant 0 : i32
    return %arg0, %c0_i32 : i32, i32
  }
}

</mosaic_0001>

<llo_original>
// kernel: tpu_custom_call.1
$region0: #{tpu_custom_call.1}
  #allocation0 [shape = 'u32[]', space=smem, size = 0x4, offset = 0x4, fixed_abs, tag = 'smem constant byte address 0x4 - core index']
  #allocation1 [shape = 'u32[144,128]{1,0:T(1,128)}', space=vmem, size = 0x12000, scoped, tag = 'internal scratch']
  %s0 = inlined_call_operand.hbm [shape: u32[8,1024], index: 0, kind: input, shape index: {}]
  %s1 = inlined_call_operand.hbm [shape: f32[8,1024], index: 1, kind: output, shape index: {}]
  %s2 = sld [smem:[#allocation0]]
  $region18: #{tpu_custom_call.1} parent=0
    _
  %s4 = ssub.s32 1, %s2
  %s5 = scalar_select 0, %s4, %s2
  $region1: #{tpu_custom_call.1} parent=0
    #allocation2 [shape = 'u8[32768]{0}', space=vmem, size = 0x8000, scoped, tag = 'input window, operand 0, single buffered']
    #allocation3 [shape = 's32[1]{0}', space=sflag, size = 0x4, scoped, tag = 'scoped memory for tpu_custom_call.1']
    #allocation4 [shape = 's32[1]{0}', space=sflag, size = 0x4, scoped, tag = 'scoped memory for tpu_custom_call.1']
    #allocation5 [shape = 'u8[32768]{0}', space=vmem, size = 0x8000, scoped, tag = 'output window, operand 0, single buffered']
    %6 = vsyncpa [#allocation3], 0
    %7 = vsyncpa [#allocation4], 0
    // Predicated region
    $region2: #{tpu_custom_call.1} parent=1 // pred_check
      _
    $region3: #{tpu_custom_call.1} parent=1 // pred_check_branch
      %9 = sbr.rel (0) target = $region5
    $region4: #{tpu_custom_call.1} parent=1 // pred_region
      %s11 = ssub.s32 1024, 1024
      %12 = vsyncadd [#allocation3], %s11
      %s14 = sshll.u32 [#allocation2], 4
      %s15 = int_to_ptr.vmem [resolvable:$true] %s14
      %17 = dma.hbm_to_vmem [thread:$0]  %s0, 1024, %s15, [#allocation3]
    $region5: #{tpu_custom_call.1} parent=1 // pred_fallthru
      _
    // Predicated region
    $region6: #{tpu_custom_call.1} parent=1 // pred_check
      _
    $region7: #{tpu_custom_call.1} parent=1 // pred_check_branch
      %19 = sbr.rel (0) target = $region9
    $region8: #{tpu_custom_call.1} parent=1 // pred_region
      %20 = dma.done [#allocation3], 1024
    $region9: #{tpu_custom_call.1} parent=1 // pred_fallthru
      _
    %v21 = vld [vmem:[#allocation2] sm:$0xff]
    %v22 = vld [vmem:[#allocation2 + $0x8] sm:$0xff]
    %v23 = vld [vmem:[#allocation2 + $0x10] sm:$0xff]
    %v24 = vld [vmem:[#allocation2 + $0x18] sm:$0xff]
    %v25 = vld [vmem:[#allocation2 + $0x20] sm:$0xff]
    %v26 = vld [vmem:[#allocation2 + $0x28] sm:$0xff]
    %v27 = vld [vmem:[#allocation2 + $0x30] sm:$0xff]
    %v28 = vld [vmem:[#allocation2 + $0x38] sm:$0xff]
    %vm29 = vcmp.lt.u32.totalorder %v21, 2147483648
    %vm30 = vcmp.lt.u32.totalorder %v22, 2147483648
    %vm31 = vcmp.lt.u32.totalorder %v23, 2147483648
    %vm32 = vcmp.lt.u32.totalorder %v24, 2147483648
    %vm33 = vcmp.lt.u32.totalorder %v25, 2147483648
    %vm34 = vcmp.lt.u32.totalorder %v26, 2147483648
    %vm35 = vcmp.lt.u32.totalorder %v27, 2147483648
    %vm36 = vcmp.lt.u32.totalorder %v28, 2147483648
    %v37 = vsel %vm29, 1, 0
    %v38 = vsel %vm30, 1, 0
    %v39 = vsel %vm31, 1, 0
    %v40 = vsel %vm32, 1, 0
    %v41 = vsel %vm33, 1, 0
    %v42 = vsel %vm34, 1, 0
    %v43 = vsel %vm35, 1, 0
    %v44 = vsel %vm36, 1, 0
    %v45 = vcvt.s32.f32 %v37
    %v46 = vcvt.s32.f32 %v38
    %v47 = vcvt.s32.f32 %v39
    %v48 = vcvt.s32.f32 %v40
    %v49 = vcvt.s32.f32 %v41
    %v50 = vcvt.s32.f32 %v42
    %v51 = vcvt.s32.f32 %v43
    %v52 = vcvt.s32.f32 %v44
    %53 = vst [vmem:[#allocation5] sm:$0xff] %v45
    %54 = vst [vmem:[#allocation5 + $0x8] sm:$0xff] %v46
    %55 = vst [vmem:[#allocation5 + $0x10] sm:$0xff] %v47
    %56 = vst [vmem:[#allocation5 + $0x18] sm:$0xff] %v48
    %57 = vst [vmem:[#allocation5 + $0x20] sm:$0xff] %v49
    %58 = vst [vmem:[#allocation5 + $0x28] sm:$0xff] %v50
    %59 = vst [vmem:[#allocation5 + $0x30] sm:$0xff] %v51
    %60 = vst [vmem:[#allocation5 + $0x38] sm:$0xff] %v52
    // Predicated region
    $region10: #{tpu_custom_call.1} parent=1 // pred_check
      _
    $region11: #{tpu_custom_call.1} parent=1 // pred_check_branch
      %62 = sbr.rel (0) target = $region13
    $region12: #{tpu_custom_call.1} parent=1 // pred_region
      %s64 = ssub.s32 1024, 1024
      %65 = vsyncadd [#allocation4], %s64
      %s67 = sshll.u32 [#allocation5], 4
      %s68 = int_to_ptr.vmem [resolvable:$true] %s67
      %70 = dma.vmem_to_hbm [thread:$0]  %s68, 1024, %s1, [#allocation4]
    $region13: #{tpu_custom_call.1} parent=1 // pred_fallthru
      _
    // Predicated region
    $region14: #{tpu_custom_call.1} parent=1 // pred_check
      _
    $region15: #{tpu_custom_call.1} parent=1 // pred_check_branch
      %72 = sbr.rel (0) target = $region17
    $region16: #{tpu_custom_call.1} parent=1 // pred_region
      %73 = dma.done [#allocation4], 1024
    $region17: #{tpu_custom_call.1} parent=1 // pred_fallthru
      _
    %74 = vsyncpa [#allocation3], 1
    %75 = vsyncpa [#allocation4], 1

</llo_original>
